<compile_context>
chip_gen: v5e
topology: v5e:2x2
jax: 0.10.0
libtpu: 0.0.40
codegen_flags: <defaults>
</compile_context>

<pallas_src>
import jax
import jax.numpy as jnp
from jax.experimental import pallas as pl
from jax.experimental.pallas import tpu as pltpu

_LANES = 128


def _laplacian_kernel(neg_inv_a_ref, x_ref, o_ref):
    # neg_inv_a_ref: (1,) scalar (= -1/a) in SMEM
    # x_ref / o_ref: (tile_rows, 128) tiles in VMEM, native dtype
    neg_inv_a = neg_inv_a_ref[0]
    x = x_ref[...].astype(jnp.float32)
    o_ref[...] = jnp.exp(jnp.abs(x) * neg_inv_a).astype(o_ref.dtype)


def _tpu_generation():
    """Best-effort TPU generation from the device kind string (0 = unknown)."""
    try:
        kind = (jax.devices()[0].device_kind or "").lower()
    except Exception:
        kind = ""
    if "v7" in kind or "tpu7" in kind or "7x" in kind:
        return 7
    if "v6" in kind:
        return 6
    if "v5" in kind:
        return 5
    return 0


def _pick_block_config(itemsize, gen):
    """Row-tile size (per-buffer block bytes) and min sublane multiple."""
    if gen >= 7:
        target_bytes = 4 << 20   # 4 MiB: ~16 MiB in flight < 32 MiB scoped / 64 MiB phys
    elif gen == 6:
        target_bytes = 2 << 20   # 2 MiB: ~85%+ of HBM roofline, 8 MiB in flight
    else:
        target_bytes = 1 << 20   # 1 MiB: safe under v5e's 16 MiB default scoped VMEM
    min_sublane = max(1, 32 // itemsize)   # 8 (f32), 16 (bf16), 32 (int8/fp8)
    tile_rows = target_bytes // (_LANES * itemsize)
    tile_rows = max(min_sublane, (tile_rows // min_sublane) * min_sublane)
    return tile_rows, min_sublane


def laplacian_activation(x, a, *, tile_rows=None):
    """Elementwise exp(-|x| / a). x: any-shape float array, a: scalar parameter."""
    orig_shape = x.shape
    dtype = x.dtype
    total = x.size
    itemsize = jnp.dtype(dtype).itemsize

    # Hoisted scalar prep: one tiny op, not an input-tensor pre-scale.
    neg_inv_a = (-1.0 / jnp.asarray(a, dtype=jnp.float32)).reshape(1)

    flat = jnp.ravel(x)
    main = (total // _LANES) * _LANES  # 128-divisible prefix handled by the kernel

    if main == 0:
        # Tiny input (< 128 elements): a kernel launch isn't worth it.
        y = jnp.exp(jnp.abs(flat).astype(jnp.float32) * neg_inv_a[0]).astype(dtype)
        return y.reshape(orig_shape)

    gen = _tpu_generation()
    auto_rows, min_sublane = _pick_block_config(itemsize, gen)
    if tile_rows is None:
        tile_rows = auto_rows

    rows = main // _LANES
    x2d = flat[:main].reshape(rows, _LANES)  # pure reshape (no copy) when main == total

    # Block rows: full-extent block for small inputs, otherwise a block aligned
    # to the dtype's minimum sublane tile. Trailing partial row-blocks are
    # masked by Pallas.
    tr = min(tile_rows, rows)
    if tr != rows:
        tr = max(min_sublane, (tr // min_sublane) * min_sublane)
    grid = (pl.cdiv(rows, tr),)

    # On v7x, actually shard row tiles across both TensorCores.
    if gen >= 7:
        dim_sem = (getattr(pltpu, "CORE_PARALLEL", "parallel"),)
    else:
        dim_sem = ("parallel",)

    cost = pl.CostEstimate(
        flops=2 * main,                       # abs + mul per element
        transcendentals=main,                 # exp per element
        bytes_accessed=2 * main * itemsize,
    )

    out2d = pl.pallas_call(
        _laplacian_kernel,
        out_shape=jax.ShapeDtypeStruct((rows, _LANES), dtype),
        grid_spec=pltpu.PrefetchScalarGridSpec(
            num_scalar_prefetch=0,
            grid=grid,
            in_specs=[
                pl.BlockSpec(memory_space=pltpu.SMEM),          # -1/a scalar
                pl.BlockSpec((tr, _LANES), lambda i: (i, 0)),   # x tile
            ],
            out_specs=pl.BlockSpec((tr, _LANES), lambda i: (i, 0)),
        ),
        compiler_params=pltpu.CompilerParams(
            dimension_semantics=dim_sem,
        ),
        cost_estimate=cost,
    )(neg_inv_a, x2d)

    out_flat = out2d.reshape(-1)
    if main != total:
        # Pad-free tail: the < 128-element remainder is computed with plain jnp
        # (no extra full HBM passes over x / y).
        tail = flat[main:]
        tail_out = jnp.exp(
            jnp.abs(tail).astype(jnp.float32) * neg_inv_a[0]
        ).astype(dtype)
        out_flat = jnp.concatenate([out_flat, tail_out])
    return out_flat.reshape(orig_shape)


if __name__ == "__main__":
    key = jax.random.PRNGKey(0)

    # Deterministic parameter init, matching nn.Parameter(a * torch.ones(1)) with a=1.0
    a_param = jnp.ones((1,), dtype=jnp.float32) * 1.0
    a_val = a_param[0]

    # 1) NCHW-style f32 input like the torch module would see (conv activations)
    x = jax.random.normal(key, (2, 4, 16, 16), dtype=jnp.float32)
    y = jax.block_until_ready(laplacian_activation(x, a_val))
    y_ref = jnp.exp(-jnp.abs(x) / a_val)
    assert y.shape == x.shape and y.dtype == x.dtype
    assert jnp.allclose(y, y_ref, atol=1e-6, rtol=1e-6)

    # 2) Non-128-divisible total (exercises prefix-kernel + jnp tail path)
    k2 = jax.random.PRNGKey(1)
    x2 = jax.random.normal(k2, (2, 67), dtype=jnp.float32)  # 134 elements
    y2 = jax.block_until_ready(laplacian_activation(x2, a_val))
    assert jnp.allclose(y2, jnp.exp(-jnp.abs(x2) / a_val), atol=1e-6, rtol=1e-6)

    # 3) Tiny input (< 128 elements -> pure jnp path)
    k3 = jax.random.PRNGKey(2)
    x3 = jax.random.normal(k3, (3, 5, 7), dtype=jnp.float32)  # 105 elements
    y3 = jax.block_until_ready(laplacian_activation(x3, a_val))
    assert jnp.allclose(y3, jnp.exp(-jnp.abs(x3) / a_val), atol=1e-6, rtol=1e-6)

    # 4) bf16 input (exercises min-sublane handling + f32 in-register compute)
    xb = jax.random.normal(key, (2, 4, 16, 16), dtype=jnp.bfloat16)
    yb = jax.block_until_ready(laplacian_activation(xb, a_val))
    yb_ref = jnp.exp(-jnp.abs(xb.astype(jnp.float32)) / a_val).astype(jnp.bfloat16)
    assert yb.shape == xb.shape and yb.dtype == xb.dtype
    assert jnp.allclose(
        yb.astype(jnp.float32), yb_ref.astype(jnp.float32), atol=2e-2, rtol=2e-2
    )

    print("KERNEL_OK")
</pallas_src>

<mosaic_0001>
module attributes {stable_mosaic.version = 11 : i64} {
  func.func @_laplacian_kernel(%arg0: i32, %arg1: memref<1xf32, #tpu.memory_space<smem>>, %arg2: memref<16x128xf32, #tpu.memory_space<vmem>>, %arg3: memref<16x128xf32, #tpu.memory_space<vmem>>) attributes {dimension_semantics = [#tpu.dimension_semantics<parallel>], iteration_bounds = array<i64: 1>, scalar_prefetch = 0 : i64, scratch_operands = 0 : i64, tpu.core_type = #tpu.core_type<tc>, window_params = [{transform_indices = @transform_0, window_bounds = array<i64: 1>}, {transform_indices = @transform_1, window_bounds = array<i64: 16, 128>}, {transform_indices = @transform_2, window_bounds = array<i64: 16, 128>}]} {
    %c0 = arith.constant 0 : index
    %0 = memref.load %arg1[%c0] : memref<1xf32, #tpu.memory_space<smem>>
    %c0_0 = arith.constant 0 : index
    %c0_1 = arith.constant 0 : index
    %1 = vector.load %arg2[%c0_0, %c0_1] : memref<16x128xf32, #tpu.memory_space<vmem>>, vector<16x128xf32>
    %2 = math.absf %1 : vector<16x128xf32>
    %3 = vector.broadcast %0 : f32 to vector<16x128xf32>
    %4 = arith.mulf %2, %3 : vector<16x128xf32>
    %5 = math.exp %4 : vector<16x128xf32>
    %c0_2 = arith.constant 0 : index
    %c0_3 = arith.constant 0 : index
    %6 = vector.load %arg3[%c0_2, %c0_3] : memref<16x128xf32, #tpu.memory_space<vmem>>, vector<16x128xf32>
    tpu.vector_store %arg3[%c0_2, %c0_3], %5 {strides = array<i32>} : memref<16x128xf32, #tpu.memory_space<vmem>>, vector<16x128xf32>,
    return
  }
  func.func @transform_0(%arg0: i32) -> i32 {
    %c0_i32 = arith.constant 0 : i32
    %c0_i32_0 = arith.constant 0 : i32
    return %c0_i32 : i32
  }
  func.func @transform_1(%arg0: i32) -> (i32, i32) {
    %c0_i32 = arith.constant 0 : i32
    %c0_i32_0 = arith.constant 0 : i32
    return %arg0, %c0_i32 : i32, i32
  }
  func.func @transform_2(%arg0: i32) -> (i32, i32) {
    %c0_i32 = arith.constant 0 : i32
    %c0_i32_0 = arith.constant 0 : i32
    return %arg0, %c0_i32 : i32, i32
  }
}

</mosaic_0001>

<llo_original>
// kernel: tpu_custom_call.1
$region0: #{tpu_custom_call.1}
  #allocation0 [shape = 'u32[]', space=smem, size = 0x4, offset = 0x4, fixed_abs, tag = 'smem constant byte address 0x4 - core index']
  #allocation1 [shape = 'u32[72,128]{1,0:T(1,128)}', space=vmem, size = 0x9000, scoped, tag = 'internal scratch']
  #allocation2 [shape = 'f32[1]{0:T(128)S(6)}', space=smem, size = 0x200, scoped, tag = 'scoped memory for tpu_custom_call.1']
  %s0 = inlined_call_operand.<no memory space> [shape: f32[1], index: 0, kind: input, shape index: {}]
  %s1 = inlined_call_operand.hbm [shape: f32[16,128], index: 1, kind: input, shape index: {}]
  %s2 = inlined_call_operand.hbm [shape: f32[16,128], index: 2, kind: output, shape index: {}]
  %s3 = sld [smem:[#allocation0]]
  $region22: #{tpu_custom_call.1} parent=0
    _
  %s5 = ssub.s32 1, %s3
  %s6 = scalar_select 0, %s5, %s3
  %7 = sst [smem:[#allocation2]] %s0
  $region1: #{tpu_custom_call.1} parent=0
    #allocation3 [shape = 'u8[8192]{0}', space=vmem, size = 0x2000, scoped, tag = 'input window, operand 1, single buffered']
    #allocation4 [shape = 's32[1]{0}', space=sflag, size = 0x4, scoped, tag = 'scoped memory for tpu_custom_call.1']
    #allocation5 [shape = 's32[1]{0}', space=sflag, size = 0x4, scoped, tag = 'scoped memory for tpu_custom_call.1']
    #allocation6 [shape = 'u8[8192]{0}', space=vmem, size = 0x2000, scoped, tag = 'output window, operand 0, single buffered']
    %8 = vsyncpa [#allocation4], 0
    %9 = vsyncpa [#allocation5], 0
    // Predicated region
    $region2: #{tpu_custom_call.1} parent=1 // pred_check
      _
    $region3: #{tpu_custom_call.1} parent=1 // pred_check_branch
      %11 = sbr.rel (0) target = $region5
    $region4: #{tpu_custom_call.1} parent=1 // pred_region
      _
    $region5: #{tpu_custom_call.1} parent=1 // pred_fallthru
      _
    // Predicated region
    $region6: #{tpu_custom_call.1} parent=1 // pred_check
      _
    $region7: #{tpu_custom_call.1} parent=1 // pred_check_branch
      %13 = sbr.rel (0) target = $region9
    $region8: #{tpu_custom_call.1} parent=1 // pred_region
      %15 = vsyncadd [#allocation4], 0
      %s16 = sshll.u32 %s1, 4
      %s17 = int_to_ptr.hbm [resolvable:$true] %s16
      %s18 = sshll.u32 [#allocation3], 4
      %s19 = int_to_ptr.vmem [resolvable:$true] %s18
      %24 = dma.hbm_to_vmem [thread:$0]  %s17, 256, %s19, [#allocation4], 128, 128, 8
    $region9: #{tpu_custom_call.1} parent=1 // pred_fallthru
      _
    // Predicated region
    $region10: #{tpu_custom_call.1} parent=1 // pred_check
      _
    $region11: #{tpu_custom_call.1} parent=1 // pred_check_branch
      %26 = sbr.rel (0) target = $region13
    $region12: #{tpu_custom_call.1} parent=1 // pred_region
      %28 = dma.done [#allocation4], 256
    $region13: #{tpu_custom_call.1} parent=1 // pred_fallthru
      _
    %s29 = sld [smem:[#allocation2]]
    %v30 = vld [vmem:[#allocation3] sm:$0xff]
    %v31 = vld [vmem:[#allocation3 + $0x8] sm:$0xff]
    %v32 = vand.u32 2147483647, %v30
    %v33 = vand.u32 2147483647, %v31
    %v34 = vstv %s29
    %v35 = vmul.f32 %v32, %v34
    %v36 = vmul.f32 %v33, %v34
    %v37 = vmul.f32 %v35, 1.442695
    %v38 = vpow.pop %v37
    %v39 = vmul.f32 %v36, 1.442695
    %v40 = vpow.pop %v39
    %41 = vst [vmem:[#allocation6] sm:$0xff] %v38
    %42 = vst [vmem:[#allocation6 + $0x8] sm:$0xff] %v40
    // Predicated region
    $region14: #{tpu_custom_call.1} parent=1 // pred_check
      _
    $region15: #{tpu_custom_call.1} parent=1 // pred_check_branch
      %44 = sbr.rel (0) target = $region17
    $region16: #{tpu_custom_call.1} parent=1 // pred_region
      %46 = vsyncadd [#allocation5], 0
      %s47 = sshll.u32 [#allocation6], 4
      %s48 = int_to_ptr.vmem [resolvable:$true] %s47
      %s49 = sshll.u32 %s2, 4
      %s50 = int_to_ptr.hbm [resolvable:$true] %s49
      %55 = dma.vmem_to_hbm [thread:$0]  %s48, 256, %s50, [#allocation5], 128, 128, 8
    $region17: #{tpu_custom_call.1} parent=1 // pred_fallthru
      _
    // Predicated region
    $region18: #{tpu_custom_call.1} parent=1 // pred_check
      _
    $region19: #{tpu_custom_call.1} parent=1 // pred_check_branch
      %57 = sbr.rel (0) target = $region21
    $region20: #{tpu_custom_call.1} parent=1 // pred_region
      %59 = dma.done [#allocation5], 256
    $region21: #{tpu_custom_call.1} parent=1 // pred_fallthru
      _
    %60 = vsyncpa [#allocation4], 1
    %61 = vsyncpa [#allocation5], 1

</llo_original>
